<compile_context>
chip_gen: v7x
topology: tpu7x:2x2x1
jax: 0.10.0
libtpu: 0.0.40
codegen_flags: <defaults>
</compile_context>

<pallas_src>
import functools

import jax
import jax.numpy as jnp
from jax.experimental import pallas as pl
from jax.experimental.pallas import tpu as pltpu


def _round_up(x, m):
    return ((x + m - 1) // m) * m


def _log_sigmoid(x):
    # Numerically stable log(sigmoid(x)) = min(x, 0) - log1p(exp(-|x|)).
    # exp never overflows; exp/log1p run on the EUP slot.
    return jnp.minimum(x, 0.0) - jnp.log1p(jnp.exp(-jnp.abs(x)))


def _nsl_kernel(single_batch, inv_n, in_ref, out_ref, noise_ref, row_ref):
    inp = in_ref[...]          # (TB, E)    input dtype (f32 or bf16)
    outv = out_ref[...]        # (TB, E)
    noise = noise_ref[...]     # (TB, N, E) input dtype — NOT cast up front

    # Positive-sample score: per-row dot product.  Only TB*E elements (N x
    # smaller than the noise work), so a VPU multiply + lane reduce is fine.
    inp_f32 = inp.astype(jnp.float32)
    out_score = jnp.sum(outv.astype(jnp.float32) * inp_f32, axis=-1,
                        keepdims=True)                                   # (TB, 1)
    out_loss = _log_sigmoid(out_score)

    # Negative-sample scores: batched contraction over E on the MXU
    # (flash-attention-style einsum), f32 accumulation.  This keeps the
    # E-reduction off the XLU so the kernel stays HBM-bound on v6e/v7x.
    scores = jnp.einsum("bne,bke->bnk", noise, inp[:, None, :],
                        preferred_element_type=jnp.float32)              # (TB, N, 1)
    noise_logsig = _log_sigmoid(-scores[:, :, 0])                        # (TB, N)
    noise_sum = jnp.sum(noise_logsig, axis=-1, keepdims=True)            # (TB, 1)

    if single_batch:
        # PyTorch B==1 path: noise_loss keeps its noise dim, the scalar out_loss
        # broadcasts over it and .mean() averages over N:
        #   -> out_loss + mean_n(log sigmoid(-score_n)).
        row_ref[...] = out_loss + noise_sum * inv_n
    else:
        row_ref[...] = out_loss + noise_sum


def negative_sampling_loss(input_vectors, output_vectors, noise_vectors,
                           *, noise_tile_bytes=8 << 20):
    B, E = input_vectors.shape
    Bn, N, En = noise_vectors.shape
    assert Bn == B and En == E

    itemsize = jnp.dtype(noise_vectors.dtype).itemsize
    # Sublane multiple for the batch-row dim: 8 (f32), 16 (bf16), 32 (int8/fp8).
    sub = max(8, 32 // itemsize)

    # Generation-aware VMEM capacity (v7x: 64 MiB per TensorCore).
    try:
        vmem_cap = int(pltpu.get_tpu_info().vmem_capacity_bytes)
    except Exception:  # pragma: no cover - conservative fallback
        vmem_cap = 64 << 20
    # Keep the multi-buffered noise tiles + temporaries comfortably inside VMEM.
    tile_budget = min(int(noise_tile_bytes), vmem_cap // 6)

    row_bytes = N * E * itemsize
    tb = max(1, tile_budget // row_bytes)
    if B > sub:
        # Guarantee >= 2 grid blocks so both v7x TensorCores get work.
        tb = min(tb, _round_up(pl.cdiv(B, 2), sub))
    tb = min(tb, B)
    if tb < B:
        # All non-final blocks share block_shape -> row dim must be a multiple
        # of the native sublane packing for this dtype.
        tb = min(B, max(sub, (tb // sub) * sub))
    num_blocks = pl.cdiv(B, tb)

    # Triple-buffer the noise stream only when tiles are small (DMA issue
    # latency / grid-step overhead otherwise exposed); skip at >= 4 MiB tiles.
    noise_tile = tb * row_bytes
    noise_spec_kwargs = {}
    n_noise_bufs = 2
    if noise_tile < (4 << 20) and num_blocks >= 4:
        n_noise_bufs = 3
        noise_spec_kwargs["pipeline_mode"] = pl.Buffered(3)

    # VMEM estimate: noise buffers, double-buffered row tiles and outputs,
    # f32 score temporaries / casts, plus a fixed margin.  Always set the limit.
    vmem_need = (n_noise_bufs * noise_tile
                 + 2 * 2 * tb * E * itemsize          # input/output row tiles
                 + 2 * tb * 128 * 4                   # padded (tb, 1) out blocks
                 + 6 * tb * N * 4                     # scores / log-sigmoid temps
                 + 4 * tb * E * 4                     # f32 casts of row tiles
                 + (2 << 20))
    vmem_limit = int(min(max(vmem_need, 32 << 20), (vmem_cap * 3) // 4))

    kernel = functools.partial(_nsl_kernel, B == 1, 1.0 / float(N))

    per_row = pl.pallas_call(
        kernel,
        out_shape=jax.ShapeDtypeStruct((B, 1), jnp.float32),
        grid=(num_blocks,),
        in_specs=[
            pl.BlockSpec((tb, E), lambda i: (i, 0)),                        # input rows
            pl.BlockSpec((tb, E), lambda i: (i, 0)),                        # output rows
            pl.BlockSpec((tb, N, E), lambda i: (i, 0, 0),
                         **noise_spec_kwargs),                              # noise tile
        ],
        out_specs=pl.BlockSpec((tb, 1), lambda i: (i, 0)),
        compiler_params=pltpu.CompilerParams(
            dimension_semantics=("parallel",),
            vmem_limit_bytes=vmem_limit),
    )(input_vectors, output_vectors, noise_vectors)

    # Per-row partial results; the tiny final reduction lives in the wrapper so
    # the grid axis can stay fully parallel (no serialized accumulator block).
    return -jnp.mean(per_row)


def negative_sampling_loss_ref(input_vectors, output_vectors, noise_vectors):
    """Pure-JAX reference with identical semantics to the PyTorch module."""
    B, _ = input_vectors.shape
    out_score = jnp.einsum("be,be->b", output_vectors, input_vectors)
    out_loss = jnp.log(jax.nn.sigmoid(out_score))                        # (B,)
    noise_score = jnp.einsum("bne,be->bn", -noise_vectors, input_vectors)
    noise_logsig = jnp.log(jax.nn.sigmoid(noise_score))                  # (B, N)
    if B != 1:
        return -(out_loss + noise_logsig.sum(axis=1)).mean()
    return -(out_loss[:, None] + noise_logsig).mean()


if __name__ == "__main__":
    key = jax.random.PRNGKey(0)
    keys = jax.random.split(key, 12)
    E, N = 32, 8

    # 1) Multi-batch case (sum over noise dim, mean over batch), single block.
    B = 4
    inp = jax.random.normal(keys[0], (B, E), dtype=jnp.float32)
    outv = jax.random.normal(keys[1], (B, E), dtype=jnp.float32)
    noise = jax.random.normal(keys[2], (B, N, E), dtype=jnp.float32)
    loss = jax.block_until_ready(negative_sampling_loss(inp, outv, noise))
    ref = negative_sampling_loss_ref(inp, outv, noise)
    assert jnp.allclose(loss, ref, rtol=1e-5, atol=1e-5), (loss, ref)

    # 2) BATCH_SIZE == 1 special case of the module (mean over the noise dim).
    in1 = jax.random.normal(keys[3], (1, E), dtype=jnp.float32)
    out1 = jax.random.normal(keys[4], (1, E), dtype=jnp.float32)
    noise1 = jax.random.normal(keys[5], (1, N, E), dtype=jnp.float32)
    loss1 = jax.block_until_ready(negative_sampling_loss(in1, out1, noise1))
    ref1 = negative_sampling_loss_ref(in1, out1, noise1)
    assert jnp.allclose(loss1, ref1, rtol=1e-5, atol=1e-5), (loss1, ref1)

    # 3) B not divisible by tb: forces multi-block grid with a partial last
    #    block (masked rows) and exercises the Buffered(3) small-tile path.
    B3 = 36
    in3 = jax.random.normal(keys[6], (B3, E), dtype=jnp.float32)
    out3 = jax.random.normal(keys[7], (B3, E), dtype=jnp.float32)
    noise3 = jax.random.normal(keys[8], (B3, N, E), dtype=jnp.float32)
    loss3 = jax.block_until_ready(
        negative_sampling_loss(in3, out3, noise3, noise_tile_bytes=1024))
    ref3 = negative_sampling_loss_ref(in3, out3, noise3)
    assert jnp.allclose(loss3, ref3, rtol=1e-5, atol=1e-5), (loss3, ref3)

    # 4) bf16 inputs (the bandwidth-bound production path): contraction in bf16
    #    with f32 accumulation; compare against an f32 reference of the same
    #    bf16 values.  Also hits the 16-row sublane rounding + partial block.
    B4 = 40
    in4 = jax.random.normal(keys[9], (B4, E), dtype=jnp.float32).astype(jnp.bfloat16)
    out4 = jax.random.normal(keys[10], (B4, E), dtype=jnp.float32).astype(jnp.bfloat16)
    noise4 = jax.random.normal(keys[11], (B4, N, E), dtype=jnp.float32).astype(jnp.bfloat16)
    loss4 = jax.block_until_ready(
        negative_sampling_loss(in4, out4, noise4, noise_tile_bytes=1024))
    ref4 = negative_sampling_loss_ref(in4.astype(jnp.float32),
                                      out4.astype(jnp.float32),
                                      noise4.astype(jnp.float32))
    assert jnp.allclose(loss4, ref4, rtol=1e-3, atol=1e-3), (loss4, ref4)

    print("KERNEL_OK")
</pallas_src>

<mosaic_0001>
module attributes {stable_mosaic.version = 11 : i64} {
  func.func @_nsl_kernel(%arg0: i32, %arg1: memref<4x32xf32, #tpu.memory_space<vmem>>, %arg2: memref<4x32xf32, #tpu.memory_space<vmem>>, %arg3: memref<4x8x32xf32, #tpu.memory_space<vmem>>, %arg4: memref<4x1xf32, #tpu.memory_space<vmem>>) attributes {dimension_semantics = [#tpu.dimension_semantics<parallel>], iteration_bounds = array<i64: 1>, scalar_prefetch = 0 : i64, scratch_operands = 0 : i64, tpu.core_type = #tpu.core_type<tc>, window_params = [{transform_indices = @transform_0, window_bounds = array<i64: 4, 32>}, {transform_indices = @transform_1, window_bounds = array<i64: 4, 32>}, {transform_indices = @transform_2, window_bounds = array<i64: 4, 8, 32>}, {transform_indices = @transform_3, window_bounds = array<i64: 4, 1>}]} {
    %c0 = arith.constant 0 : index
    %c0_0 = arith.constant 0 : index
    %0 = vector.load %arg1[%c0, %c0_0] : memref<4x32xf32, #tpu.memory_space<vmem>>, vector<4x32xf32>
    %c0_1 = arith.constant 0 : index
    %c0_2 = arith.constant 0 : index
    %1 = vector.load %arg2[%c0_1, %c0_2] : memref<4x32xf32, #tpu.memory_space<vmem>>, vector<4x32xf32>
    %c0_3 = arith.constant 0 : index
    %c0_4 = arith.constant 0 : index
    %c0_5 = arith.constant 0 : index
    %2 = vector.load %arg3[%c0_3, %c0_4, %c0_5] : memref<4x8x32xf32, #tpu.memory_space<vmem>>, vector<4x8x32xf32>
    %3 = arith.mulf %1, %0 : vector<4x32xf32>
    %cst = arith.constant dense<0.000000e+00> : vector<4xf32>
    %4 = vector.multi_reduction <add>, %3, %cst [1] : vector<4x32xf32> to vector<4xf32>
    %5 = vector.shape_cast %4 : vector<4xf32> to vector<4x1xf32>
    %cst_6 = arith.constant 0.000000e+00 : f32
    %6 = vector.broadcast %cst_6 : f32 to vector<4x1xf32>
    %7 = arith.minimumf %5, %6 : vector<4x1xf32>
    %8 = math.absf %5 : vector<4x1xf32>
    %cst_7 = arith.constant 0.000000e+00 : f32
    %9 = vector.broadcast %cst_7 : f32 to vector<4x1xf32>
    %10 = arith.subf %9, %8 : vector<4x1xf32>
    %11 = math.exp %10 : vector<4x1xf32>
    %12 = math.log1p %11 : vector<4x1xf32>
    %13 = arith.subf %7, %12 : vector<4x1xf32>
    %14 = vector.shape_cast %0 : vector<4x32xf32> to vector<4x1x32xf32>
    "tpu.trace_start"() <{level = 10 : i32, message = "bne,bke->bnk"}> : () -> ()
    %cst_8 = arith.constant dense<0.000000e+00> : vector<4x8x1xf32>
    %15 = tpu.matmul %2, %14, %cst_8 {dimension_numbers = #tpu.dot_dimension_numbers<[2], [2], [1], [1], [0, 0, 0, 1, 1, 1], [0], [0]>} : vector<4x8x32xf32>, vector<4x1x32xf32>, vector<4x8x1xf32> -> vector<4x8x1xf32>
    "tpu.trace_stop"() : () -> ()
    %16 = vector.shape_cast %15 : vector<4x8x1xf32> to vector<4x8xf32>
    %cst_9 = arith.constant 0.000000e+00 : f32
    %17 = vector.broadcast %cst_9 : f32 to vector<4x8xf32>
    %18 = arith.subf %17, %16 : vector<4x8xf32>
    %cst_10 = arith.constant 0.000000e+00 : f32
    %19 = vector.broadcast %cst_10 : f32 to vector<4x8xf32>
    %20 = arith.minimumf %18, %19 : vector<4x8xf32>
    %21 = math.absf %18 : vector<4x8xf32>
    %cst_11 = arith.constant 0.000000e+00 : f32
    %22 = vector.broadcast %cst_11 : f32 to vector<4x8xf32>
    %23 = arith.subf %22, %21 : vector<4x8xf32>
    %24 = math.exp %23 : vector<4x8xf32>
    %25 = math.log1p %24 : vector<4x8xf32>
    %26 = arith.subf %20, %25 : vector<4x8xf32>
    %cst_12 = arith.constant dense<0.000000e+00> : vector<4xf32>
    %27 = vector.multi_reduction <add>, %26, %cst_12 [1] : vector<4x8xf32> to vector<4xf32>
    %28 = vector.shape_cast %27 : vector<4xf32> to vector<4x1xf32>
    %29 = arith.addf %13, %28 : vector<4x1xf32>
    %c0_13 = arith.constant 0 : index
    %c0_14 = arith.constant 0 : index
    %30 = vector.load %arg4[%c0_13, %c0_14] : memref<4x1xf32, #tpu.memory_space<vmem>>, vector<4x1xf32>
    tpu.vector_store %arg4[%c0_13, %c0_14], %29 {strides = array<i32>} : memref<4x1xf32, #tpu.memory_space<vmem>>, vector<4x1xf32>,
    return
  }
  func.func @transform_0(%arg0: i32) -> (i32, i32) {
    %c0_i32 = arith.constant 0 : i32
    %c0_i32_0 = arith.constant 0 : i32
    return %arg0, %c0_i32 : i32, i32
  }
  func.func @transform_1(%arg0: i32) -> (i32, i32) {
    %c0_i32 = arith.constant 0 : i32
    %c0_i32_0 = arith.constant 0 : i32
    return %arg0, %c0_i32 : i32, i32
  }
  func.func @transform_2(%arg0: i32) -> (i32, i32, i32) {
    %c0_i32 = arith.constant 0 : i32
    %c0_i32_0 = arith.constant 0 : i32
    %c0_i32_1 = arith.constant 0 : i32
    return %arg0, %c0_i32, %c0_i32_0 : i32, i32, i32
  }
  func.func @transform_3(%arg0: i32) -> (i32, i32) {
    %c0_i32 = arith.constant 0 : i32
    %c0_i32_0 = arith.constant 0 : i32
    return %arg0, %c0_i32 : i32, i32
  }
}

</mosaic_0001>

<llo_original>
// kernel: tpu_custom_call.1
$region0: #{tpu_custom_call.1}
  #allocation0 [shape = 'u32[]', space=smem, size = 0x4, offset = 0x4, fixed_abs, tag = 'smem constant byte address 0x4 - core index']
  #allocation1 [shape = 'u32[144,128]{1,0:T(1,128)}', space=vmem, size = 0x12000, scoped, tag = 'internal scratch']
  %s0 = inlined_call_operand.hbm [shape: f32[4,32], index: 0, kind: input, shape index: {}]
  %s1 = inlined_call_operand.hbm [shape: f32[4,32], index: 1, kind: input, shape index: {}]
  %s2 = inlined_call_operand.hbm [shape: f32[4,8,32], index: 2, kind: input, shape index: {}]
  %s3 = inlined_call_operand.vmem [shape: f32[4,1], index: 3, kind: output, shape index: {}]
  %s4 = sld [smem:[#allocation0]]
  $region34: #{tpu_custom_call.1} parent=0
    _
  %s6 = ssub.s32 1, %s4
  %s7 = scalar_select 0, %s6, %s4
  $region1: #{tpu_custom_call.1} parent=0
    #allocation2 [shape = 'u8[2048]{0}', space=vmem, size = 0x800, scoped, tag = 'input window, operand 0, single buffered']
    #allocation3 [shape = 's32[1]{0}', space=sflag, size = 0x4, scoped, tag = 'scoped memory for tpu_custom_call.1']
    #allocation4 [shape = 'u8[2048]{0}', space=vmem, size = 0x800, scoped, tag = 'input window, operand 1, single buffered']
    #allocation5 [shape = 's32[1]{0}', space=sflag, size = 0x4, scoped, tag = 'scoped memory for tpu_custom_call.1']
    #allocation6 [shape = 'u8[16384]{0}', space=vmem, size = 0x4000, scoped, tag = 'input window, operand 2, single buffered']
    %8 = vsyncpa [#allocation3], 0
    %9 = vsyncpa [#allocation5], 0
    // Predicated region
    $region2: #{tpu_custom_call.1} parent=1 // pred_check
      _
    $region3: #{tpu_custom_call.1} parent=1 // pred_check_branch
      %11 = sbr.rel (0) target = $region5
    $region4: #{tpu_custom_call.1} parent=1 // pred_region
      %s13 = ssub.s32 64, 64
      %14 = vsyncadd [#allocation3], %s13
      %s16 = sshll.u32 [#allocation2], 4
      %s17 = int_to_ptr.vmem [resolvable:$true] %s16
      %19 = dma.hbm_to_vmem [thread:$0]  %s0, 64, %s17, [#allocation3]
    $region5: #{tpu_custom_call.1} parent=1 // pred_fallthru
      _
    // Predicated region
    $region6: #{tpu_custom_call.1} parent=1 // pred_check
      _
    $region7: #{tpu_custom_call.1} parent=1 // pred_check_branch
      %21 = sbr.rel (0) target = $region9
    $region8: #{tpu_custom_call.1} parent=1 // pred_region
      %s23 = ssub.s32 64, 64
      %24 = vsyncadd [#allocation5], %s23
      %s26 = sshll.u32 [#allocation4], 4
      %s27 = int_to_ptr.vmem [resolvable:$true] %s26
      %29 = dma.hbm_to_vmem [thread:$0]  %s1, 64, %s27, [#allocation5]
    $region9: #{tpu_custom_call.1} parent=1 // pred_fallthru
      _
    // Predicated region
    $region10: #{tpu_custom_call.1} parent=1 // pred_check
      _
    $region11: #{tpu_custom_call.1} parent=1 // pred_check_branch
      %31 = sbr.rel (0) target = $region13
    $region12: #{tpu_custom_call.1} parent=1 // pred_region
      %s33 = ssub.s32 512, 512
      %34 = vsyncadd [#allocation5], %s33
      %s35 = sshll.u32 [#allocation6], 4
      %s36 = int_to_ptr.vmem [resolvable:$true] %s35
      %41 = dma.hbm_to_vmem [thread:$0]  %s2, 512, %s36, [#allocation5], 128, 128, 8
    $region13: #{tpu_custom_call.1} parent=1 // pred_fallthru
      _
    // Predicated region
    $region14: #{tpu_custom_call.1} parent=1 // pred_check
      _
    $region15: #{tpu_custom_call.1} parent=1 // pred_check_branch
      %43 = sbr.rel (0) target = $region17
    $region16: #{tpu_custom_call.1} parent=1 // pred_region
      %44 = dma.done [#allocation3], 64
    $region17: #{tpu_custom_call.1} parent=1 // pred_fallthru
      _
    // Predicated region
    $region18: #{tpu_custom_call.1} parent=1 // pred_check
      _
    $region19: #{tpu_custom_call.1} parent=1 // pred_check_branch
      %46 = sbr.rel (0) target = $region21
    $region20: #{tpu_custom_call.1} parent=1 // pred_region
      %47 = dma.done [#allocation5], 64
    $region21: #{tpu_custom_call.1} parent=1 // pred_fallthru
      _
    // Predicated region
    $region22: #{tpu_custom_call.1} parent=1 // pred_check
      _
    $region23: #{tpu_custom_call.1} parent=1 // pred_check_branch
      %49 = sbr.rel (0) target = $region25
    $region24: #{tpu_custom_call.1} parent=1 // pred_region
      %50 = dma.done [#allocation5], 512
    $region25: #{tpu_custom_call.1} parent=1 // pred_fallthru
      _
    %v51 = vld [vmem:[#allocation2] sm:$0xf]
    %v52 = vld [vmem:[#allocation4] sm:$0xf]
    %v53 = vld [vmem:[#allocation6] sm:$0xff]
    %v54 = vld [vmem:[#allocation6 + $0x8] sm:$0xff]
    %v55 = vld [vmem:[#allocation6 + $0x10] sm:$0xff]
    %v56 = vld [vmem:[#allocation6 + $0x18] sm:$0xff]
    %v57 = vmul.f32 %v52, %v51
    %vm58 = vcmask 257024
    %v59 = vsel %vm58, %v57, 0.0
    %60 = vadd.xlane.f32.xlu0 %v59
    %v61 = vpop.xlane.xlu0 %60
    %v62 = vmin.f32 %v61, 0.0
    %v63 = vand.u32 2147483647, %v61
    %v64 = vsub.f32 0.0, %v63
    %v65 = vmul.f32 %v64, 1.442695
    %v66 = vpow.pop %v65
    %v67 = vadd.f32 %v66, 1.0
    %v68 = vlog2.pop %v67
    %v69 = vmul.f32 %v68, 0.6931472
    %v70 = vmul.f32 -0.5, %v66
    %v71 = vadd.f32 %v70, 1.0
    %v72 = vmul.f32 %v71, %v66
    %v73 = vand.u32 2147483647, %v66
    %vm74 = vcmp.lt.f32.partialorder %v73, 0.0004427343
    %v75 = vsel %vm74, %v72, %v69
    %v76 = vsub.f32 %v62, %v75
    %v79 = vunpack.c.l.s4 1966171168
    %v80 = vunpack.c.0.s8 %v79
    %v81 = vlaneseq
    %v82 = vshrl.u32 %v81, 7
    %v83 = vsub.s32 %v80, %v82
    %v84 = vrot.slane %v51, %v83
    %v85 = vcombine.high %v84, %v84
    %v87 = vunpack.c.l.s4 1966171168
    %v88 = vunpack.c.0.s8 %v87
    %v89 = vlaneseq
    %v90 = vshrl.u32 %v89, 7
    %v91 = vsub.s32 %v88, %v90
    %v92 = vrot.slane %v84, %v91
    %v94 = vunpack.c.l.s4 1966171168
    %v95 = vunpack.c.0.s8 %v94
    %v96 = vlaneseq
    %v97 = vshrl.u32 %v96, 7
    %v98 = vsub.s32 %v95, %v97
    %v99 = vrot.slane %v85, %v98
    %v100 = vcombine.high %v92, %v92
    %v101 = vcombine.high %v99, %v99
    %v102 = vlaneseq
    %v103 = vshrl.u32 %v102, 7
    %v104 = vsub.s32 0, %v103
    %v105 = vrot.slane %v92, %v104
    %v107 = vmul.f32 %v53, %v105
    %vm108 = vcmask 261120
    %v109 = vsel %vm108, %v107, 0.0
    %110 = vadd.xlane.f32.xlu0 %v109
    %v111 = vpop.xlane.xlu0 %110
    %v112 = vlaneseq
    %v113 = vshrl.u32 %v112, 7
    %v114 = vsub.s32 0, %v113
    %v115 = vrot.slane %v99, %v114
    %v117 = vmul.f32 %v54, %v115
    %v118 = vsel %vm108, %v117, 0.0
    %119 = vadd.xlane.f32.xlu0 %v118
    %v120 = vpop.xlane.xlu0 %119
    %v121 = vlaneseq
    %v122 = vshrl.u32 %v121, 7
    %v123 = vsub.s32 0, %v122
    %v124 = vrot.slane %v100, %v123
    %v126 = vmul.f32 %v55, %v124
    %v127 = vsel %vm108, %v126, 0.0
    %128 = vadd.xlane.f32.xlu0 %v127
    %v129 = vpop.xlane.xlu0 %128
    %v130 = vlaneseq
    %v131 = vshrl.u32 %v130, 7
    %v132 = vsub.s32 0, %v131
    %v133 = vrot.slane %v101, %v132
    %v135 = vmul.f32 %v56, %v133
    %v136 = vsel %vm108, %v135, 0.0
    %137 = vadd.xlane.f32.xlu0 %v136
    %v138 = vpop.xlane.xlu0 %137
    %v139 = vsub.f32 0.0, %v111
    %v140 = vsub.f32 0.0, %v120
    %v141 = vsub.f32 0.0, %v129
    %v142 = vsub.f32 0.0, %v138
    %v143 = vmin.f32 %v139, 0.0
    %v144 = vmin.f32 %v140, 0.0
    %v145 = vmin.f32 %v141, 0.0
    %v146 = vmin.f32 %v142, 0.0
    %v147 = vand.u32 2147483647, %v139
    %v148 = vand.u32 2147483647, %v140
    %v149 = vand.u32 2147483647, %v141
    %v150 = vand.u32 2147483647, %v142
    %v151 = vsub.f32 0.0, %v147
    %v152 = vsub.f32 0.0, %v148
    %v153 = vsub.f32 0.0, %v149
    %v154 = vsub.f32 0.0, %v150
    %v155 = vmul.f32 %v151, 1.442695
    %v156 = vpow.pop %v155
    %v157 = vmul.f32 %v152, 1.442695
    %v158 = vpow.pop %v157
    %v159 = vmul.f32 %v153, 1.442695
    %v160 = vpow.pop %v159
    %v161 = vmul.f32 %v154, 1.442695
    %v162 = vpow.pop %v161
    %v163 = vadd.f32 %v156, 1.0
    %v164 = vlog2.pop %v163
    %v165 = vmul.f32 %v164, 0.6931472
    %v166 = vmul.f32 -0.5, %v156
    %v167 = vadd.f32 %v166, 1.0
    %v168 = vmul.f32 %v167, %v156
    %v169 = vand.u32 2147483647, %v156
    %vm170 = vcmp.lt.f32.partialorder %v169, 0.0004427343
    %v171 = vsel %vm170, %v168, %v165
    %v172 = vadd.f32 %v158, 1.0
    %v173 = vlog2.pop %v172
    %v174 = vmul.f32 %v173, 0.6931472
    %v175 = vmul.f32 -0.5, %v158
    %v176 = vadd.f32 %v175, 1.0
    %v177 = vmul.f32 %v176, %v158
    %v178 = vand.u32 2147483647, %v158
    %vm179 = vcmp.lt.f32.partialorder %v178, 0.0004427343
    %v180 = vsel %vm179, %v177, %v174
    %v181 = vadd.f32 %v160, 1.0
    %v182 = vlog2.pop %v181
    %v183 = vmul.f32 %v182, 0.6931472
    %v184 = vmul.f32 -0.5, %v160
    %v185 = vadd.f32 %v184, 1.0
    %v186 = vmul.f32 %v185, %v160
    %v187 = vand.u32 2147483647, %v160
    %vm188 = vcmp.lt.f32.partialorder %v187, 0.0004427343
    %v189 = vsel %vm188, %v186, %v183
    %v190 = vadd.f32 %v162, 1.0
    %v191 = vlog2.pop %v190
    %v192 = vmul.f32 %v191, 0.6931472
    %v193 = vmul.f32 -0.5, %v162
    %v194 = vadd.f32 %v193, 1.0
    %v195 = vmul.f32 %v194, %v162
    %v196 = vand.u32 2147483647, %v162
    %vm197 = vcmp.lt.f32.partialorder %v196, 0.0004427343
    %v198 = vsel %vm197, %v195, %v192
    %v199 = vsub.f32 %v143, %v171
    %v200 = vsub.f32 %v144, %v180
    %v201 = vsub.f32 %v145, %v189
    %v202 = vsub.f32 %v146, %v198
    %207 = vset.pattern.permute.xlu0 0
    %208 = vperm.xlu0 %207, %v199
    %v209 = vpop.permute.xlu0 %208
    %210 = vset.pattern.permute.xlu0 0
    %211 = vperm.xlu0 %210, %v200
    %v212 = vpop.permute.xlu0 %211
    %213 = vset.pattern.permute.xlu0 0
    %214 = vperm.xlu0 %213, %v201
    %v215 = vpop.permute.xlu0 %214
    %216 = vset.pattern.permute.xlu0 0
    %217 = vperm.xlu0 %216, %v202
    %v218 = vpop.permute.xlu0 %217
    %v219 = vlaneseq
    %v220 = vand.u32 %v219, 127
    %v221 = vlaneseq
    %v222 = vshrl.u32 %v221, 7
    %v223 = vsub.s32 %v220, %v222
    %v224 = vrot.slane %v209, %v223
    %v225 = vlaneseq
    %v226 = vshrl.u32 %v225, 7
    %v227 = vsub.s32 %v220, %v226
    %v228 = vrot.slane %v212, %v227
    %v229 = vlaneseq
    %v230 = vshrl.u32 %v229, 7
    %v231 = vsub.s32 %v220, %v230
    %v232 = vrot.slane %v215, %v231
    %v233 = vlaneseq
    %v234 = vshrl.u32 %v233, 7
    %v235 = vsub.s32 %v220, %v234
    %v236 = vrot.slane %v218, %v235
    %vm237 = vcmask 1041409
    %v238 = vsel %vm237, %v228, %v224
    %vm239 = vcmask 1042434
    %v240 = vsel %vm239, %v232, %v238
    %vm241 = vcmask 1043459
    %v242 = vsel %vm241, %v236, %v240
    %vm244 = vcmask 60416
    %v245 = vsel %vm244, %v242, 0.0
    %246 = vadd.xlane.f32.xlu0 %v245
    %v247 = vpop.xlane.xlu0 %246
    %v248 = vadd.f32 %v76, %v247
    %vm249 = vcmask 3072
    %250 = vst.msk [vmem:[%s3] sm:$0xf] %vm249, %v248
    // Predicated region
    $region26: #{tpu_custom_call.1} parent=1 // pred_check
      _
    $region27: #{tpu_custom_call.1} parent=1 // pred_check_branch
      %252 = sbr.rel (0) target = $region29
    $region28: #{tpu_custom_call.1} parent=1 // pred_region
      _
    $region29: #{tpu_custom_call.1} parent=1 // pred_fallthru
      _
    // Predicated region
    $region30: #{tpu_custom_call.1} parent=1 // pred_check
      _
    $region31: #{tpu_custom_call.1} parent=1 // pred_check_branch
      %254 = sbr.rel (0) target = $region33
    $region32: #{tpu_custom_call.1} parent=1 // pred_region
      _
    $region33: #{tpu_custom_call.1} parent=1 // pred_fallthru
      _
    %255 = vsyncpa [#allocation3], 1
    %256 = vsyncpa [#allocation5], 1

</llo_original>
